<compile_context>
chip_gen: v7x
topology: tpu7x:2x2x1
jax: 0.10.0
libtpu: 0.0.40
codegen_flags: <defaults>
</compile_context>

<pallas_src>
import jax
import jax.numpy as jnp
from jax.experimental import pallas as pl
from jax.experimental.pallas import tpu as pltpu

LANES = 128
NEG_BIG = -1e30  # pad value for fake logit lanes (exp underflows to exactly 0)


def _round_up(n, m):
    return ((n + m - 1) // m) * m


def actor_kernel(x_ref, w1_ref, b1_ref, w2_ref, b2_ref, o_ref):
    # fc1 + ReLU: (tile_b, D) @ (D, H) on the MXU (bf16 operands, f32 accumulate).
    x = x_ref[...].astype(w1_ref.dtype)
    h = jnp.dot(x, w1_ref[...], preferred_element_type=jnp.float32)
    h = jnp.maximum(h + b1_ref[...], 0.0)                       # (tile_b, H) f32

    # fc2 at full 128-lane width (w2 zero-padded columns, b2 padded with -1e30).
    logits = jnp.dot(h.astype(w2_ref.dtype), w2_ref[...],
                     preferred_element_type=jnp.float32)
    logits = logits + b2_ref[...]                               # (tile_b, A_pad) f32

    # Row-wise softmax; padded lanes contribute exp(.) == 0 exactly.
    m = jnp.max(logits, axis=-1, keepdims=True)                 # XLU lane reduce
    e = jnp.exp(logits - m)                                     # EUP
    s = jnp.sum(e, axis=-1, keepdims=True)                      # XLU lane reduce
    inv = pl.reciprocal(s)                                      # exact, (tile_b, 1)
    probs = e * inv                                             # VPU broadcast mul

    # Store only the real action columns: masked (tile_b, A) store -> minimal HBM
    # write traffic for tiny action dims.
    A = o_ref.shape[-1]
    o_ref[...] = probs[:, :A].astype(o_ref.dtype)


def prepare_actor_params(w1, b1, w2, b2, *, compute_dtype=jnp.bfloat16):
    """Pad / cast the Actor weights once (hoisted out of the per-step forward).

    w1: (D, H), b1: (H,) or (1, H), w2: (H, A), b2: (A,) or (1, A).
    Returns (w1c, b1r, w2_pad, b2_pad, A) where:
      * w1c / w2_pad are cast to `compute_dtype` for the MXU fast path,
      * w2 is zero-padded to A_pad = multiple of 128 lanes, b2 is padded with -1e30
        so padded lanes never receive probability mass,
      * biases stay in f32 for exact accumulation.
    """
    H, A = w2.shape
    A_pad = max(LANES, _round_up(A, LANES))
    w1c = jnp.asarray(w1).astype(compute_dtype)
    b1r = jnp.asarray(b1).reshape(1, -1).astype(jnp.float32)
    w2_pad = jnp.pad(jnp.asarray(w2), ((0, 0), (0, A_pad - A))).astype(compute_dtype)
    b2_pad = jnp.pad(jnp.asarray(b2).reshape(1, A).astype(jnp.float32),
                     ((0, 0), (0, A_pad - A)), constant_values=NEG_BIG)
    return (w1c, b1r, w2_pad, b2_pad, A)


def actor_forward(x, params, *, tile_b=2048):
    """Actor forward: softmax(relu(x @ W1 + b1) @ W2 + b2, axis=1).

    x: (B, D) f32; params from prepare_actor_params. Returns (B, A) f32 probs.
    """
    w1, b1, w2_pad, b2_pad, A = params
    B, D = x.shape
    H = w1.shape[1]
    A_pad = w2_pad.shape[1]

    # Batch tile: big enough to amortize ~0.35us/grid-step overhead, always a
    # multiple of 8 (sublane constraint), capped so the grid has >=2 steps when
    # possible (both v7x TensorCores busy) and never exceeds the (rounded) batch.
    tile_b = max(8, (int(tile_b) // 8) * 8)
    per_core = max(8, _round_up(pl.cdiv(B, 2), 8))
    tile_b = min(tile_b, per_core, _round_up(B, 8))
    grid = (pl.cdiv(B, tile_b),)  # partial last block handled by Pallas masking

    cost = pl.CostEstimate(
        flops=2 * B * (D * H + H * A_pad),
        transcendentals=B * A_pad,
        bytes_accessed=(4 * B * D + 4 * B * A
                        + w1.size * w1.dtype.itemsize
                        + w2_pad.size * w2_pad.dtype.itemsize
                        + 4 * (H + A_pad)),
    )

    out = pl.pallas_call(
        actor_kernel,
        out_shape=jax.ShapeDtypeStruct((B, A), jnp.float32),
        grid=grid,
        in_specs=[
            pl.BlockSpec((tile_b, D), lambda i: (i, 0)),    # x: batch-tiled
            pl.BlockSpec((D, H), lambda i: (0, 0)),         # w1: resident
            pl.BlockSpec((1, H), lambda i: (0, 0)),         # b1: resident
            pl.BlockSpec((H, A_pad), lambda i: (0, 0)),     # w2 (padded): resident
            pl.BlockSpec((1, A_pad), lambda i: (0, 0)),     # b2 (padded): resident
        ],
        out_specs=pl.BlockSpec((tile_b, A), lambda i: (i, 0)),
        compiler_params=pltpu.CompilerParams(
            dimension_semantics=("parallel",),              # split grid across TCs (v7x)
        ),
        cost_estimate=cost,
    )(x, w1, b1, w2_pad, b2_pad)

    return out


def init_actor_params(key, input_dim, output_dim, hidden=128):
    # Mirrors nn.Linear default init: U(-1/sqrt(fan_in), 1/sqrt(fan_in)).
    k1, k2, k3, k4 = jax.random.split(key, 4)
    bound1 = 1.0 / jnp.sqrt(jnp.float32(input_dim))
    bound2 = 1.0 / jnp.sqrt(jnp.float32(hidden))
    w1 = jax.random.uniform(k1, (input_dim, hidden), jnp.float32, -bound1, bound1)
    b1 = jax.random.uniform(k2, (hidden,), jnp.float32, -bound1, bound1)
    w2 = jax.random.uniform(k3, (hidden, output_dim), jnp.float32, -bound2, bound2)
    b2 = jax.random.uniform(k4, (output_dim,), jnp.float32, -bound2, bound2)
    return w1, b1, w2, b2


if __name__ == "__main__":
    key = jax.random.PRNGKey(0)
    kx, kp = jax.random.split(key)

    batch = 8
    input_dim = 4    # CartPole observation dim
    output_dim = 2   # CartPole action dim

    x = jax.random.normal(kx, (batch, input_dim), jnp.float32)
    w1, b1, w2, b2 = init_actor_params(kp, input_dim, output_dim)

    params = prepare_actor_params(w1, b1, w2, b2)   # pad + bf16-cast once
    out = actor_forward(x, params)
    out = jax.block_until_ready(out)

    # Reference 1: identical math at the same (bf16-operand, f32-accumulate) precision.
    xb = x.astype(jnp.bfloat16)
    h_ref = jnp.maximum(
        jnp.dot(xb, w1.astype(jnp.bfloat16), preferred_element_type=jnp.float32)
        + b1.reshape(1, -1), 0.0)
    logits_ref = jnp.dot(h_ref.astype(jnp.bfloat16), w2.astype(jnp.bfloat16),
                         preferred_element_type=jnp.float32) + b2.reshape(1, -1)
    ref_bf16 = jax.nn.softmax(logits_ref, axis=1)

    # Reference 2: pure-f32 math of the original PyTorch module (documents the
    # precision impact of the bf16 MXU fast path).
    ref_f32 = jax.nn.softmax(
        jnp.maximum(x @ w1 + b1.reshape(1, -1), 0.0) @ w2 + b2.reshape(1, -1), axis=1)

    assert out.shape == (batch, output_dim)
    assert bool(jnp.all(jnp.isfinite(out)))
    assert jnp.allclose(out, ref_bf16, atol=1e-4), float(jnp.max(jnp.abs(out - ref_bf16)))
    assert jnp.allclose(out, ref_f32, atol=2e-2), float(jnp.max(jnp.abs(out - ref_f32)))
    assert jnp.allclose(jnp.sum(out, axis=1), 1.0, atol=1e-5)

    print("KERNEL_OK")
</pallas_src>

<mosaic_0001>
module attributes {stable_mosaic.version = 11 : i64} {
  func.func @actor_kernel(%arg0: i32, %arg1: memref<8x4xf32, #tpu.memory_space<vmem>>, %arg2: memref<4x128xbf16, #tpu.memory_space<vmem>>, %arg3: memref<1x128xf32, #tpu.memory_space<vmem>>, %arg4: memref<128x128xbf16, #tpu.memory_space<vmem>>, %arg5: memref<1x128xf32, #tpu.memory_space<vmem>>, %arg6: memref<8x2xf32, #tpu.memory_space<vmem>>) attributes {dimension_semantics = [#tpu.dimension_semantics<parallel>], iteration_bounds = array<i64: 1>, scalar_prefetch = 0 : i64, scratch_operands = 0 : i64, tpu.core_type = #tpu.core_type<tc>, window_params = [{transform_indices = @transform_0, window_bounds = array<i64: 8, 4>}, {pipeline_mode = #tpu.pipeline_mode<synchronous>, transform_indices = @transform_1, window_bounds = array<i64: 4, 128>}, {pipeline_mode = #tpu.pipeline_mode<synchronous>, transform_indices = @transform_2, window_bounds = array<i64: 1, 128>}, {pipeline_mode = #tpu.pipeline_mode<synchronous>, transform_indices = @transform_3, window_bounds = array<i64: 128, 128>}, {pipeline_mode = #tpu.pipeline_mode<synchronous>, transform_indices = @transform_4, window_bounds = array<i64: 1, 128>}, {transform_indices = @transform_5, window_bounds = array<i64: 8, 2>}]} {
    %c0 = arith.constant 0 : index
    %c0_0 = arith.constant 0 : index
    %0 = vector.load %arg1[%c0, %c0_0] : memref<8x4xf32, #tpu.memory_space<vmem>>, vector<8x4xf32>
    %1 = arith.truncf %0 : vector<8x4xf32> to vector<8x4xbf16>
    %c0_1 = arith.constant 0 : index
    %c0_2 = arith.constant 0 : index
    %2 = vector.load %arg2[%c0_1, %c0_2] : memref<4x128xbf16, #tpu.memory_space<vmem>>, vector<4x128xbf16>
    %cst = arith.constant dense<0.000000e+00> : vector<8x128xf32>
    %3 = tpu.matmul %1, %2, %cst {dimension_numbers = #tpu.dot_dimension_numbers<[1], [0], [0], [1], [0, 0, 1, 1], [], []>} : vector<8x4xbf16>, vector<4x128xbf16>, vector<8x128xf32> -> vector<8x128xf32>
    %c0_3 = arith.constant 0 : index
    %c0_4 = arith.constant 0 : index
    %4 = vector.load %arg3[%c0_3, %c0_4] : memref<1x128xf32, #tpu.memory_space<vmem>>, vector<1x128xf32>
    %5 = vector.broadcast %4 : vector<1x128xf32> to vector<8x128xf32>
    %6 = arith.addf %3, %5 : vector<8x128xf32>
    %cst_5 = arith.constant 0.000000e+00 : f32
    %7 = vector.broadcast %cst_5 : f32 to vector<8x128xf32>
    %8 = arith.maximumf %6, %7 : vector<8x128xf32>
    %9 = arith.truncf %8 : vector<8x128xf32> to vector<8x128xbf16>
    %c0_6 = arith.constant 0 : index
    %c0_7 = arith.constant 0 : index
    %10 = vector.load %arg4[%c0_6, %c0_7] : memref<128x128xbf16, #tpu.memory_space<vmem>>, vector<128x128xbf16>
    %cst_8 = arith.constant dense<0.000000e+00> : vector<8x128xf32>
    %11 = tpu.matmul %9, %10, %cst_8 {dimension_numbers = #tpu.dot_dimension_numbers<[1], [0], [0], [1], [0, 0, 1, 1], [], []>} : vector<8x128xbf16>, vector<128x128xbf16>, vector<8x128xf32> -> vector<8x128xf32>
    %c0_9 = arith.constant 0 : index
    %c0_10 = arith.constant 0 : index
    %12 = vector.load %arg5[%c0_9, %c0_10] : memref<1x128xf32, #tpu.memory_space<vmem>>, vector<1x128xf32>
    %13 = vector.broadcast %12 : vector<1x128xf32> to vector<8x128xf32>
    %14 = arith.addf %11, %13 : vector<8x128xf32>
    %cst_11 = arith.constant dense<0xFF800000> : vector<8xf32>
    %15 = vector.multi_reduction <maximumf>, %14, %cst_11 [1] : vector<8x128xf32> to vector<8xf32>
    %16 = vector.shape_cast %15 : vector<8xf32> to vector<8x1xf32>
    %17 = vector.broadcast %16 : vector<8x1xf32> to vector<8x128xf32>
    %18 = arith.subf %14, %17 : vector<8x128xf32>
    %19 = math.exp %18 : vector<8x128xf32>
    %cst_12 = arith.constant dense<0.000000e+00> : vector<8xf32>
    %20 = vector.multi_reduction <add>, %19, %cst_12 [1] : vector<8x128xf32> to vector<8xf32>
    %21 = vector.shape_cast %20 : vector<8xf32> to vector<8x1xf32>
    %22 = tpu.reciprocal %21 : vector<8x1xf32> -> vector<8x1xf32>
    %23 = vector.broadcast %22 : vector<8x1xf32> to vector<8x128xf32>
    %24 = arith.mulf %19, %23 : vector<8x128xf32>
    %25 = vector.extract_strided_slice %24 {offsets = [0, 0], sizes = [8, 2], strides = [1, 1]} : vector<8x128xf32> to vector<8x2xf32>
    %c0_13 = arith.constant 0 : index
    %c0_14 = arith.constant 0 : index
    %26 = vector.load %arg6[%c0_13, %c0_14] : memref<8x2xf32, #tpu.memory_space<vmem>>, vector<8x2xf32>
    tpu.vector_store %arg6[%c0_13, %c0_14], %25 {strides = array<i32>} : memref<8x2xf32, #tpu.memory_space<vmem>>, vector<8x2xf32>,
    return
  }
  func.func @transform_0(%arg0: i32) -> (i32, i32) {
    %c0_i32 = arith.constant 0 : i32
    %c0_i32_0 = arith.constant 0 : i32
    return %arg0, %c0_i32 : i32, i32
  }
  func.func @transform_1(%arg0: i32) -> (i32, i32) {
    %c0_i32 = arith.constant 0 : i32
    %c0_i32_0 = arith.constant 0 : i32
    %c0_i32_1 = arith.constant 0 : i32
    return %c0_i32, %c0_i32_0 : i32, i32
  }
  func.func @transform_2(%arg0: i32) -> (i32, i32) {
    %c0_i32 = arith.constant 0 : i32
    %c0_i32_0 = arith.constant 0 : i32
    %c0_i32_1 = arith.constant 0 : i32
    return %c0_i32, %c0_i32_0 : i32, i32
  }
  func.func @transform_3(%arg0: i32) -> (i32, i32) {
    %c0_i32 = arith.constant 0 : i32
    %c0_i32_0 = arith.constant 0 : i32
    %c0_i32_1 = arith.constant 0 : i32
    return %c0_i32, %c0_i32_0 : i32, i32
  }
  func.func @transform_4(%arg0: i32) -> (i32, i32) {
    %c0_i32 = arith.constant 0 : i32
    %c0_i32_0 = arith.constant 0 : i32
    %c0_i32_1 = arith.constant 0 : i32
    return %c0_i32, %c0_i32_0 : i32, i32
  }
  func.func @transform_5(%arg0: i32) -> (i32, i32) {
    %c0_i32 = arith.constant 0 : i32
    %c0_i32_0 = arith.constant 0 : i32
    return %arg0, %c0_i32 : i32, i32
  }
}

</mosaic_0001>

<llo_original>
// kernel: tpu_custom_call.1
$region0: #{tpu_custom_call.1}
  #allocation0 [shape = 'u32[]', space=smem, size = 0x4, offset = 0x4, fixed_abs, tag = 'smem constant byte address 0x4 - core index']
  #allocation1 [shape = 'u32[144,128]{1,0:T(1,128)}', space=vmem, size = 0x12000, scoped, tag = 'internal scratch']
  %s0 = inlined_call_operand.vmem [shape: f32[8,4], index: 0, kind: input, shape index: {}]
  %s1 = inlined_call_operand.vmem [shape: bf16[4,128], index: 1, kind: input, shape index: {}]
  %s2 = inlined_call_operand.vmem [shape: f32[1,128], index: 2, kind: input, shape index: {}]
  %s3 = inlined_call_operand.hbm [shape: bf16[128,128], index: 3, kind: input, shape index: {}]
  %s4 = inlined_call_operand.vmem [shape: f32[1,128], index: 4, kind: input, shape index: {}]
  %s5 = inlined_call_operand.vmem [shape: f32[8,2], index: 5, kind: output, shape index: {}]
  %s6 = sld [smem:[#allocation0]]
  $region34: #{tpu_custom_call.1} parent=0
    _
  %s8 = ssub.s32 1, %s6
  %s9 = scalar_select 0, %s8, %s6
  $region1: #{tpu_custom_call.1} parent=0
    #allocation2 [shape = 'u8[32768]{0}', space=vmem, size = 0x8000, scoped, tag = 'input window, operand 3, single buffered']
    #allocation3 [shape = 's32[1]{0}', space=sflag, size = 0x4, scoped, tag = 'scoped memory for tpu_custom_call.1']
    %10 = vsyncpa [#allocation3], 0
    // Predicated region
    $region2: #{tpu_custom_call.1} parent=1 // pred_check
      _
    $region3: #{tpu_custom_call.1} parent=1 // pred_check_branch
      %12 = sbr.rel (0) target = $region5
    $region4: #{tpu_custom_call.1} parent=1 // pred_region
      _
    $region5: #{tpu_custom_call.1} parent=1 // pred_fallthru
      _
    // Predicated region
    $region6: #{tpu_custom_call.1} parent=1 // pred_check
      _
    $region7: #{tpu_custom_call.1} parent=1 // pred_check_branch
      %14 = sbr.rel (0) target = $region9
    $region8: #{tpu_custom_call.1} parent=1 // pred_region
      _
    $region9: #{tpu_custom_call.1} parent=1 // pred_fallthru
      _
    // Predicated region
    $region10: #{tpu_custom_call.1} parent=1 // pred_check
      _
    $region11: #{tpu_custom_call.1} parent=1 // pred_check_branch
      %16 = sbr.rel (0) target = $region13
    $region12: #{tpu_custom_call.1} parent=1 // pred_region
      _
    $region13: #{tpu_custom_call.1} parent=1 // pred_fallthru
      _
    // Predicated region
    $region14: #{tpu_custom_call.1} parent=1 // pred_check
      _
    $region15: #{tpu_custom_call.1} parent=1 // pred_check_branch
      %18 = sbr.rel (0) target = $region17
    $region16: #{tpu_custom_call.1} parent=1 // pred_region
      %s20 = ssub.s32 1024, 1024
      %21 = vsyncadd [#allocation3], %s20
      %s22 = sshll.u32 [#allocation2], 4
      %s23 = int_to_ptr.vmem [resolvable:$true] %s22
      %28 = dma.hbm_to_vmem [thread:$0]  %s3, 1024, %s23, [#allocation3], 64, 64, 4
    $region17: #{tpu_custom_call.1} parent=1 // pred_fallthru
      _
    // Predicated region
    $region18: #{tpu_custom_call.1} parent=1 // pred_check
      _
    $region19: #{tpu_custom_call.1} parent=1 // pred_check_branch
      %30 = sbr.rel (0) target = $region21
    $region20: #{tpu_custom_call.1} parent=1 // pred_region
      _
    $region21: #{tpu_custom_call.1} parent=1 // pred_fallthru
      _
    // Predicated region
    $region22: #{tpu_custom_call.1} parent=1 // pred_check
      _
    $region23: #{tpu_custom_call.1} parent=1 // pred_check_branch
      %32 = sbr.rel (0) target = $region25
    $region24: #{tpu_custom_call.1} parent=1 // pred_region
      %33 = dma.done [#allocation3], 1024
    $region25: #{tpu_custom_call.1} parent=1 // pred_fallthru
      _
    %v35 = vld [vmem:[%s0] sm:$0xff]
    %v36 = vpack.c.bf16 %v35, %v35
    %v37 = vld [vmem:[%s1] sm:$0x3]
    %v38 = vld [vmem:[%s2] sm:$0x1]
    %v40 = vlaneseq
    %v41 = vshrl.u32 %v40, 7
    %v42 = vsub.s32 0, %v41
    %v43 = vrot.slane %v38, %v42
    %vm45 = vcmask 31744
    %v47 = vsel %vm45, %v36, 0
    %vm49 = vcmask 1041408
    %v51 = vsel %vm49, %v37, 0
    %53 = vmatprep.subr.bf16.mxu0 0
    %54 = vmatpush1.bf16.msra.mxu0 %v51
    %55 = vmatprep.subr.bf16.mxu0 0
    %56 = vmatpush1.bf16.msra.mxu0 0
    %57 = vmatprep.subr.bf16.mxu0 0
    %58 = vmatpush1.bf16.msra.mxu0 0
    %59 = vmatprep.subr.bf16.mxu0 0
    %60 = vmatpush1.bf16.msra.mxu0 0
    %61 = vmatprep.subr.bf16.mxu0 0
    %62 = vmatpush1.bf16.msra.mxu0 0
    %63 = vmatprep.subr.bf16.mxu0 0
    %64 = vmatpush1.bf16.msra.mxu0 0
    %65 = vmatprep.subr.bf16.mxu0 0
    %66 = vmatpush1.bf16.msra.mxu0 0
    %67 = vmatprep.subr.bf16.mxu0 0
    %68 = vmatpush1.bf16.msra.mxu0 0
    %69 = vmatprep.subr.bf16.mxu0 0
    %70 = vmatpush1.bf16.msra.mxu0 0
    %71 = vmatprep.subr.bf16.mxu0 0
    %72 = vmatpush1.bf16.msra.mxu0 0
    %73 = vmatprep.subr.bf16.mxu0 0
    %74 = vmatpush1.bf16.msra.mxu0 0
    %75 = vmatprep.subr.bf16.mxu0 0
    %76 = vmatpush1.bf16.msra.mxu0 0
    %77 = vmatprep.subr.bf16.mxu0 0
    %78 = vmatpush1.bf16.msra.mxu0 0
    %79 = vmatprep.subr.bf16.mxu0 0
    %80 = vmatpush1.bf16.msra.mxu0 0
    %81 = vmatprep.subr.bf16.mxu0 0
    %82 = vmatpush1.bf16.msra.mxu0 0
    %83 = vmatprep.subr.bf16.mxu0 0
    %84 = vmatpush1.bf16.msra.mxu0 0
    %85 = vmatprep.mubr.bf16.mxu0 0
    %86 = vmatmul.mubr.bf16.gmra.mrb[0].mxu0 %v47
    %v87 = vpop.f32.mrb[0].mxu0
    %v88 = vadd.f32 %v43, %v87
    %v89 = vpop.f32.mrb[0].mxu0
    %v90 = vpop.f32.mrb[0].mxu0
    %v91 = vpop.f32.mrb[0].mxu0
    %92 = vdwg.mxu0
    %v93 = vmax.f32 %v88, 0.0
    %v94 = vpack.c.bf16 %v93, %v93
    %v95 = vld [vmem:[#allocation2] sm:$0xf]
    %v96 = vld [vmem:[#allocation2 + $0x4] sm:$0xf]
    %v97 = vld [vmem:[#allocation2 + $0x8] sm:$0xf]
    %v98 = vld [vmem:[#allocation2 + $0xc] sm:$0xf]
    %v99 = vld [vmem:[#allocation2 + $0x10] sm:$0xf]
    %v100 = vld [vmem:[#allocation2 + $0x14] sm:$0xf]
    %v101 = vld [vmem:[#allocation2 + $0x18] sm:$0xf]
    %v102 = vld [vmem:[#allocation2 + $0x1c] sm:$0xf]
    %v103 = vld [vmem:[#allocation2 + $0x20] sm:$0xf]
    %v104 = vld [vmem:[#allocation2 + $0x24] sm:$0xf]
    %v105 = vld [vmem:[#allocation2 + $0x28] sm:$0xf]
    %v106 = vld [vmem:[#allocation2 + $0x2c] sm:$0xf]
    %v107 = vld [vmem:[#allocation2 + $0x30] sm:$0xf]
    %v108 = vld [vmem:[#allocation2 + $0x34] sm:$0xf]
    %v109 = vld [vmem:[#allocation2 + $0x38] sm:$0xf]
    %v110 = vld [vmem:[#allocation2 + $0x3c] sm:$0xf]
    %v111 = vld [vmem:[%s4] sm:$0x1]
    %v113 = vlaneseq
    %v114 = vshrl.u32 %v113, 7
    %v115 = vsub.s32 0, %v114
    %v116 = vrot.slane %v111, %v115
    %v134 = vunpack.c.l.b16 %v95
    %v135 = vunpack.c.l.b16 %v96
    %v136 = vunpack.c.l.b16 %v97
    %v137 = vunpack.c.l.b16 %v98
    %v138 = vunpack.c.l.b16 %v99
    %v139 = vunpack.c.l.b16 %v100
    %v140 = vunpack.c.l.b16 %v101
    %v141 = vunpack.c.l.b16 %v102
    %v142 = vunpack.c.l.b16 %v103
    %v143 = vunpack.c.l.b16 %v104
    %v144 = vunpack.c.l.b16 %v105
    %v145 = vunpack.c.l.b16 %v106
    %v146 = vunpack.c.l.b16 %v107
    %v147 = vunpack.c.l.b16 %v108
    %v148 = vunpack.c.l.b16 %v109
    %v149 = vunpack.c.l.b16 %v110
    %v150 = vpack.c.b16 %v135, %v134
    %v151 = vpack.c.b16 %v137, %v136
    %v152 = vpack.c.b16 %v139, %v138
    %v153 = vpack.c.b16 %v141, %v140
    %v154 = vpack.c.b16 %v143, %v142
    %v155 = vpack.c.b16 %v145, %v144
    %v156 = vpack.c.b16 %v147, %v146
    %v157 = vpack.c.b16 %v149, %v148
    %166 = vmatprep.subr.bf16.mxu0 0
    %167 = vmatpush1.bf16.msra.mxu0 %v150
    %168 = vmatprep.subr.bf16.mxu0 0
    %169 = vmatpush1.bf16.msra.mxu0 %v151
    %170 = vmatprep.subr.bf16.mxu0 0
    %171 = vmatpush1.bf16.msra.mxu0 %v152
    %172 = vmatprep.subr.bf16.mxu0 0
    %173 = vmatpush1.bf16.msra.mxu0 %v153
    %174 = vmatprep.subr.bf16.mxu0 0
    %175 = vmatpush1.bf16.msra.mxu0 %v154
    %176 = vmatprep.subr.bf16.mxu0 0
    %177 = vmatpush1.bf16.msra.mxu0 %v155
    %178 = vmatprep.subr.bf16.mxu0 0
    %179 = vmatpush1.bf16.msra.mxu0 %v156
    %180 = vmatprep.subr.bf16.mxu0 0
    %181 = vmatpush1.bf16.msra.mxu0 %v157
    %182 = vmatprep.subr.bf16.mxu0 0
    %183 = vmatpush1.bf16.msra.mxu0 0
    %184 = vmatprep.subr.bf16.mxu0 0
    %185 = vmatpush1.bf16.msra.mxu0 0
    %186 = vmatprep.subr.bf16.mxu0 0
    %187 = vmatpush1.bf16.msra.mxu0 0
    %188 = vmatprep.subr.bf16.mxu0 0
    %189 = vmatpush1.bf16.msra.mxu0 0
    %190 = vmatprep.subr.bf16.mxu0 0
    %191 = vmatpush1.bf16.msra.mxu0 0
    %192 = vmatprep.subr.bf16.mxu0 0
    %193 = vmatpush1.bf16.msra.mxu0 0
    %194 = vmatprep.subr.bf16.mxu0 0
    %195 = vmatpush1.bf16.msra.mxu0 0
    %196 = vmatprep.subr.bf16.mxu0 0
    %197 = vmatpush1.bf16.msra.mxu0 0
    %198 = vmatprep.mubr.bf16.mxu0 0
    %199 = vmatmul.mubr.bf16.gmra.mrb[0].mxu0 %v94
    %v200 = vpop.f32.mrb[0].mxu0
    %v201 = vadd.f32 %v116, %v200
    %v202 = vpop.f32.mrb[0].mxu0
    %v203 = vpop.f32.mrb[0].mxu0
    %v204 = vpop.f32.mrb[0].mxu0
    %205 = vdwg.mxu0
    %206 = vmax.xlane.f32.xlu0 %v201
    %v207 = vpop.xlane.xlu0 %206
    %v208 = vsub.f32 %v201, %v207
    %v209 = vmul.f32 %v208, 1.442695
    %v210 = vpow.pop %v209
    %211 = vadd.xlane.f32.xlu0 %v210
    %v212 = vpop.xlane.xlu0 %211
    %v213 = vrcp.pop %v212
    %v214 = vmul.f32 %v210, %v213
    %vm215 = vcmask 15360
    %216 = vst.msk [vmem:[%s5] sm:$0xff] %vm215, %v214
    // Predicated region
    $region26: #{tpu_custom_call.1} parent=1 // pred_check
      _
    $region27: #{tpu_custom_call.1} parent=1 // pred_check_branch
      %218 = sbr.rel (0) target = $region29
    $region28: #{tpu_custom_call.1} parent=1 // pred_region
      _
    $region29: #{tpu_custom_call.1} parent=1 // pred_fallthru
      _
    // Predicated region
    $region30: #{tpu_custom_call.1} parent=1 // pred_check
      _
    $region31: #{tpu_custom_call.1} parent=1 // pred_check_branch
      %220 = sbr.rel (0) target = $region33
    $region32: #{tpu_custom_call.1} parent=1 // pred_region
      _
    $region33: #{tpu_custom_call.1} parent=1 // pred_fallthru
      _
    %221 = vsyncpa [#allocation3], 1

</llo_original>
